<compile_context>
chip_gen: v5e
topology: v5e:2x2
jax: 0.10.0
libtpu: 0.0.40
codegen_flags: <defaults>
</compile_context>

<pallas_src>
import jax
import jax.numpy as jnp
from jax.experimental import pallas as pl
from jax.experimental.pallas import tpu as pltpu

# ---- small shapes consistent with the module ----
B = 2          # batch
N = 8          # sequence length
DIM = 32       # feature dim (dim)
HID_DIM = 64   # hidden units (hid_dim)
VOCAB = 128    # vocabulary size (vocab_num) -> lane-dense output


def final_layer_kernel(x_ref, w1_ref, b1_ref, w2_ref, b2_ref, o_ref):
    """x:(M,DIM)  w1:(DIM,HID)  b1:(1,HID)  w2:(HID,VOCAB)  b2:(1,VOCAB)."""
    x = x_ref[...]
    h = jnp.dot(x, w1_ref[...], preferred_element_type=jnp.float32) + b1_ref[...]
    h = jnp.maximum(h, 0.0)                                   # ReLU
    o_ref[...] = (jnp.dot(h, w2_ref[...], preferred_element_type=jnp.float32)
                  + b2_ref[...])


@jax.jit
def final_layer(x, kparams):
    """x: (B, N, DIM) float32. kparams hold kernel-layout (pre-packed) weights."""
    b_, n_, d_ = x.shape
    m = b_ * n_
    x2d = x.reshape(m, d_)                    # contiguous (B*N, D) slab

    w1t = kparams["w1t"]                      # (DIM, HID_DIM)
    b1 = kparams["b1"]                        # (1, HID_DIM)
    w2t = kparams["w2t"]                      # (HID_DIM, VOCAB)
    b2 = kparams["b2"]                        # (1, VOCAB)

    vmem = pl.BlockSpec(memory_space=pltpu.MemorySpace.VMEM)
    flops = 2 * m * (d_ * HID_DIM + HID_DIM * VOCAB)
    bytes_accessed = 4 * (x2d.size + w1t.size + b1.size + w2t.size + b2.size
                          + m * VOCAB)

    out2d = pl.pallas_call(
        final_layer_kernel,
        out_shape=jax.ShapeDtypeStruct((m, VOCAB), jnp.float32),
        in_specs=[vmem, vmem, vmem, vmem, vmem],
        out_specs=vmem,
        cost_estimate=pl.CostEstimate(
            flops=flops, transcendentals=0, bytes_accessed=bytes_accessed),
    )(x2d, w1t, b1, w2t, b2)

    return out2d.reshape(b_, n_, VOCAB)


def init_params(key):
    """torch nn.Linear layout: weight (out, in), bias (out,)."""
    ks = jax.random.split(key, 4)
    return {
        "w1": jax.random.normal(ks[0], (HID_DIM, DIM), jnp.float32) * 0.05,
        "b1": jax.random.normal(ks[1], (HID_DIM,), jnp.float32) * 0.05,
        "w2": jax.random.normal(ks[2], (VOCAB, HID_DIM), jnp.float32) * 0.05,
        "b2": jax.random.normal(ks[3], (VOCAB,), jnp.float32) * 0.05,
    }


def pack_params(p):
    """ONE-TIME (at init): torch (out,in) -> MXU-friendly (in,out); biases as (1,F) rows."""
    return {
        "w1t": jnp.asarray(p["w1"]).T,            # (DIM, HID_DIM)
        "b1": jnp.asarray(p["b1"]).reshape(1, -1),  # (1, HID_DIM)
        "w2t": jnp.asarray(p["w2"]).T,            # (HID_DIM, VOCAB)
        "b2": jnp.asarray(p["b2"]).reshape(1, -1),  # (1, VOCAB)
    }


def final_layer_ref(x, p):
    """Pure-JAX mirror of the PyTorch forward for a sanity check."""
    h = jnp.maximum(x @ p["w1"].T + p["b1"], 0.0)
    return h @ p["w2"].T + p["b2"]


if __name__ == "__main__":
    key = jax.random.PRNGKey(0)
    kx, kp = jax.random.split(key)
    x = jax.random.normal(kx, (B, N, DIM), jnp.float32)

    params = init_params(kp)                 # torch-layout params
    kparams = jax.block_until_ready(         # packed ONCE, reused across calls
        jax.tree_util.tree_map(jnp.asarray, pack_params(params)))

    out = final_layer(x, kparams)
    out = jax.block_until_ready(out)

    ref = final_layer_ref(x, params)
    assert out.shape == (B, N, VOCAB)
    assert jnp.allclose(out, ref, atol=1e-4, rtol=1e-4), "mismatch vs pure-JAX reference"

    print("KERNEL_OK")
</pallas_src>

<mosaic_0001>
module attributes {stable_mosaic.version = 11 : i64} {
  func.func @final_layer_kernel(%arg0: memref<16x32xf32, #tpu.memory_space<vmem>>, %arg1: memref<32x64xf32, #tpu.memory_space<vmem>>, %arg2: memref<1x64xf32, #tpu.memory_space<vmem>>, %arg3: memref<64x128xf32, #tpu.memory_space<vmem>>, %arg4: memref<1x128xf32, #tpu.memory_space<vmem>>, %arg5: memref<16x128xf32, #tpu.memory_space<vmem>>) attributes {dimension_semantics = [], scalar_prefetch = 0 : i64, scratch_operands = 0 : i64, tpu.core_type = #tpu.core_type<tc>} {
    %c0 = arith.constant 0 : index
    %c0_0 = arith.constant 0 : index
    %0 = vector.load %arg0[%c0, %c0_0] : memref<16x32xf32, #tpu.memory_space<vmem>>, vector<16x32xf32>
    %c0_1 = arith.constant 0 : index
    %c0_2 = arith.constant 0 : index
    %1 = vector.load %arg1[%c0_1, %c0_2] : memref<32x64xf32, #tpu.memory_space<vmem>>, vector<32x64xf32>
    %cst = arith.constant dense<0.000000e+00> : vector<16x64xf32>
    %2 = tpu.matmul %0, %1, %cst {dimension_numbers = #tpu.dot_dimension_numbers<[1], [0], [0], [1], [0, 0, 1, 1], [], []>} : vector<16x32xf32>, vector<32x64xf32>, vector<16x64xf32> -> vector<16x64xf32>
    %c0_3 = arith.constant 0 : index
    %c0_4 = arith.constant 0 : index
    %3 = vector.load %arg2[%c0_3, %c0_4] : memref<1x64xf32, #tpu.memory_space<vmem>>, vector<1x64xf32>
    %4 = vector.broadcast %3 : vector<1x64xf32> to vector<16x64xf32>
    %5 = arith.addf %2, %4 : vector<16x64xf32>
    %cst_5 = arith.constant 0.000000e+00 : f32
    %6 = vector.broadcast %cst_5 : f32 to vector<16x64xf32>
    %7 = arith.maximumf %5, %6 : vector<16x64xf32>
    %c0_6 = arith.constant 0 : index
    %c0_7 = arith.constant 0 : index
    %8 = vector.load %arg3[%c0_6, %c0_7] : memref<64x128xf32, #tpu.memory_space<vmem>>, vector<64x128xf32>
    %cst_8 = arith.constant dense<0.000000e+00> : vector<16x128xf32>
    %9 = tpu.matmul %7, %8, %cst_8 {dimension_numbers = #tpu.dot_dimension_numbers<[1], [0], [0], [1], [0, 0, 1, 1], [], []>} : vector<16x64xf32>, vector<64x128xf32>, vector<16x128xf32> -> vector<16x128xf32>
    %c0_9 = arith.constant 0 : index
    %c0_10 = arith.constant 0 : index
    %10 = vector.load %arg4[%c0_9, %c0_10] : memref<1x128xf32, #tpu.memory_space<vmem>>, vector<1x128xf32>
    %11 = vector.broadcast %10 : vector<1x128xf32> to vector<16x128xf32>
    %12 = arith.addf %9, %11 : vector<16x128xf32>
    %c0_11 = arith.constant 0 : index
    %c0_12 = arith.constant 0 : index
    %13 = vector.load %arg5[%c0_11, %c0_12] : memref<16x128xf32, #tpu.memory_space<vmem>>, vector<16x128xf32>
    tpu.vector_store %arg5[%c0_11, %c0_12], %12 {strides = array<i32>} : memref<16x128xf32, #tpu.memory_space<vmem>>, vector<16x128xf32>,
    return
  }
}

</mosaic_0001>

<llo_original>
// kernel: final_layer.1
$region0: #{final_layer.1}
  #allocation0 [shape = 'u32[]', space=smem, size = 0x4, offset = 0x4, fixed_abs, tag = 'smem constant byte address 0x4 - core index']
  #allocation1 [shape = 'u32[72,128]{1,0:T(1,128)}', space=vmem, size = 0x9000, scoped, tag = 'internal scratch']
  %s0 = inlined_call_operand.hbm [shape: f32[16,32], index: 0, kind: input, shape index: {}]
  %s1 = inlined_call_operand.hbm [shape: f32[32,64], index: 1, kind: input, shape index: {}]
  %s2 = inlined_call_operand.vmem [shape: f32[1,64], index: 2, kind: input, shape index: {}]
  %s3 = inlined_call_operand.hbm [shape: f32[64,128], index: 3, kind: input, shape index: {}]
  %s4 = inlined_call_operand.vmem [shape: f32[1,128], index: 4, kind: input, shape index: {}]
  %s5 = inlined_call_operand.hbm [shape: f32[16,128], index: 5, kind: output, shape index: {}]
  %s6 = sld [smem:[#allocation0]]
  $region42: #{final_layer.1} parent=0
    _
  %s8 = ssub.s32 1, %s6
  %s9 = scalar_select 0, %s8, %s6
  $region1: #{final_layer.1} parent=0
    #allocation2 [shape = 'u8[8192]{0}', space=vmem, size = 0x2000, scoped, tag = 'input window, operand 0, single buffered']
    #allocation3 [shape = 's32[1]{0}', space=sflag, size = 0x4, scoped, tag = 'scoped memory for final_layer.1']
    #allocation4 [shape = 's32[1]{0}', space=sflag, size = 0x4, scoped, tag = 'scoped memory for final_layer.1']
    #allocation5 [shape = 'u8[16384]{0}', space=vmem, size = 0x4000, scoped, tag = 'input window, operand 1, single buffered']
    #allocation6 [shape = 's32[1]{0}', space=sflag, size = 0x4, scoped, tag = 'scoped memory for final_layer.1']
    #allocation7 [shape = 'u8[32768]{0}', space=vmem, size = 0x8000, scoped, tag = 'input window, operand 3, single buffered']
    #allocation8 [shape = 'u8[8192]{0}', space=vmem, size = 0x2000, scoped, tag = 'output window, operand 0, single buffered']
    %10 = vsyncpa [#allocation3], 0
    %11 = vsyncpa [#allocation6], 0
    %12 = vsyncpa [#allocation4], 0
    // Predicated region
    $region2: #{final_layer.1} parent=1 // pred_check
      _
    $region3: #{final_layer.1} parent=1 // pred_check_branch
      %14 = sbr.rel (0) target = $region5
    $region4: #{final_layer.1} parent=1 // pred_region
      %16 = vsyncadd [#allocation3], 0
      %s17 = sshll.u32 %s0, 4
      %s18 = int_to_ptr.hbm [resolvable:$true] %s17
      %s19 = sshll.u32 [#allocation2], 4
      %s20 = int_to_ptr.vmem [resolvable:$true] %s19
      %25 = dma.hbm_to_vmem [thread:$0]  %s18, 256, %s20, [#allocation3], 128, 128, 8
    $region5: #{final_layer.1} parent=1 // pred_fallthru
      _
    // Predicated region
    $region6: #{final_layer.1} parent=1 // pred_check
      _
    $region7: #{final_layer.1} parent=1 // pred_check_branch
      %27 = sbr.rel (0) target = $region9
    $region8: #{final_layer.1} parent=1 // pred_region
      %29 = vsyncadd [#allocation6], 0
      %s30 = sshll.u32 %s1, 4
      %s31 = int_to_ptr.hbm [resolvable:$true] %s30
      %s32 = sshll.u32 [#allocation5], 4
      %s33 = int_to_ptr.vmem [resolvable:$true] %s32
      %38 = dma.hbm_to_vmem [thread:$0]  %s31, 512, %s33, [#allocation6], 128, 128, 8
    $region9: #{final_layer.1} parent=1 // pred_fallthru
      _
    // Predicated region
    $region10: #{final_layer.1} parent=1 // pred_check
      _
    $region11: #{final_layer.1} parent=1 // pred_check_branch
      %40 = sbr.rel (0) target = $region13
    $region12: #{final_layer.1} parent=1 // pred_region
      _
    $region13: #{final_layer.1} parent=1 // pred_fallthru
      _
    // Predicated region
    $region14: #{final_layer.1} parent=1 // pred_check
      _
    $region15: #{final_layer.1} parent=1 // pred_check_branch
      %42 = sbr.rel (0) target = $region17
    $region16: #{final_layer.1} parent=1 // pred_region
      %44 = vsyncadd [#allocation6], 0
      %s45 = sshll.u32 %s3, 4
      %s46 = int_to_ptr.hbm [resolvable:$true] %s45
      %s47 = sshll.u32 [#allocation7], 4
      %s48 = int_to_ptr.vmem [resolvable:$true] %s47
      %53 = dma.hbm_to_vmem [thread:$0]  %s46, 1024, %s48, [#allocation6], 128, 128, 8
    $region17: #{final_layer.1} parent=1 // pred_fallthru
      _
    // Predicated region
    $region18: #{final_layer.1} parent=1 // pred_check
      _
    $region19: #{final_layer.1} parent=1 // pred_check_branch
      %55 = sbr.rel (0) target = $region21
    $region20: #{final_layer.1} parent=1 // pred_region
      _
    $region21: #{final_layer.1} parent=1 // pred_fallthru
      _
    // Predicated region
    $region22: #{final_layer.1} parent=1 // pred_check
      _
    $region23: #{final_layer.1} parent=1 // pred_check_branch
      %57 = sbr.rel (0) target = $region25
    $region24: #{final_layer.1} parent=1 // pred_region
      %59 = dma.done [#allocation3], 256
    $region25: #{final_layer.1} parent=1 // pred_fallthru
      _
    // Predicated region
    $region26: #{final_layer.1} parent=1 // pred_check
      _
    $region27: #{final_layer.1} parent=1 // pred_check_branch
      %61 = sbr.rel (0) target = $region29
    $region28: #{final_layer.1} parent=1 // pred_region
      %63 = dma.done [#allocation6], 512
    $region29: #{final_layer.1} parent=1 // pred_fallthru
      _
    // Predicated region
    $region30: #{final_layer.1} parent=1 // pred_check
      _
    $region31: #{final_layer.1} parent=1 // pred_check_branch
      %65 = sbr.rel (0) target = $region33
    $region32: #{final_layer.1} parent=1 // pred_region
      %67 = dma.done [#allocation6], 1024
    $region33: #{final_layer.1} parent=1 // pred_fallthru
      _
    %v68 = vld [vmem:[#allocation2] sm:$0xff]
    %v69 = vld [vmem:[#allocation2 + $0x8] sm:$0xff]
    %v70 = vld [vmem:[#allocation5] sm:$0xff]
    %v71 = vld [vmem:[#allocation5 + $0x8] sm:$0xff]
    %v72 = vld [vmem:[#allocation5 + $0x10] sm:$0xff]
    %v73 = vld [vmem:[#allocation5 + $0x18] sm:$0xff]
    %v74 = vld [vmem:[%s2] sm:$0x1]
    %v76 = vperm.slane %v74, 0
    %vm78 = vcmask 261120
    %v80 = vsel %vm78, %v68, 0
    %v83 = vsel %vm78, %v69, 0
    %85 = vmatpush.msra.mxu0 0.0
    %86 = vmatpush.msra.mxu0 0.0
    %87 = vmatpush.msra.mxu0 0.0
    %88 = vmatpush.msra.mxu0 0.0
    %89 = vmatpush.msra.mxu0 0.0
    %90 = vmatpush.msra.mxu0 0.0
    %91 = vmatpush.msra.mxu0 0.0
    %92 = vmatpush.msra.mxu0 0.0
    %93 = vmatpush.msra.mxu0 0.0
    %94 = vmatpush.msra.mxu0 0.0
    %95 = vmatpush.msra.mxu0 0.0
    %96 = vmatpush.msra.mxu0 0.0
    %97 = vmatpush.msra.mxu0 %v73
    %98 = vmatpush.msra.mxu0 %v72
    %99 = vmatpush.msra.mxu0 %v71
    %100 = vmatpush.msra.mxu0 %v70
    %101 = vmatmul.f32.gmra.mxu0 %v80
    %v102 = vpop.f32.mrf.mxu0
    %v103 = vadd.f32 %v76, %v102
    %104 = vmatmul.f32.gmra.mxu0 %v83
    %v105 = vpop.f32.mrf.mxu0
    %v106 = vadd.f32 %v76, %v105
    %107 = vdwg.mxu0
    %v108 = vmax.f32 %v103, 0.0
    %v109 = vmax.f32 %v106, 0.0
    %v110 = vld [vmem:[#allocation7] sm:$0xff]
    %v111 = vld [vmem:[#allocation7 + $0x8] sm:$0xff]
    %v112 = vld [vmem:[#allocation7 + $0x10] sm:$0xff]
    %v113 = vld [vmem:[#allocation7 + $0x18] sm:$0xff]
    %v114 = vld [vmem:[#allocation7 + $0x20] sm:$0xff]
    %v115 = vld [vmem:[#allocation7 + $0x28] sm:$0xff]
    %v116 = vld [vmem:[#allocation7 + $0x30] sm:$0xff]
    %v117 = vld [vmem:[#allocation7 + $0x38] sm:$0xff]
    %v118 = vld [vmem:[%s4] sm:$0x1]
    %v120 = vperm.slane %v118, 0
    %vm122 = vcmask 523264
    %v124 = vsel %vm122, %v108, 0
    %v127 = vsel %vm122, %v109, 0
    %129 = vmatpush.msra.mxu0 0.0
    %130 = vmatpush.msra.mxu0 0.0
    %131 = vmatpush.msra.mxu0 0.0
    %132 = vmatpush.msra.mxu0 0.0
    %133 = vmatpush.msra.mxu0 0.0
    %134 = vmatpush.msra.mxu0 0.0
    %135 = vmatpush.msra.mxu0 0.0
    %136 = vmatpush.msra.mxu0 0.0
    %137 = vmatpush.msra.mxu0 %v117
    %138 = vmatpush.msra.mxu0 %v116
    %139 = vmatpush.msra.mxu0 %v115
    %140 = vmatpush.msra.mxu0 %v114
    %141 = vmatpush.msra.mxu0 %v113
    %142 = vmatpush.msra.mxu0 %v112
    %143 = vmatpush.msra.mxu0 %v111
    %144 = vmatpush.msra.mxu0 %v110
    %145 = vmatmul.f32.gmra.mxu0 %v124
    %v146 = vpop.f32.mrf.mxu0
    %v147 = vadd.f32 %v120, %v146
    %148 = vmatmul.f32.gmra.mxu0 %v127
    %v149 = vpop.f32.mrf.mxu0
    %v150 = vadd.f32 %v120, %v149
    %151 = vdwg.mxu0
    %152 = vst [vmem:[#allocation8] sm:$0xff] %v147
    %153 = vst [vmem:[#allocation8 + $0x8] sm:$0xff] %v150
    // Predicated region
    $region34: #{final_layer.1} parent=1 // pred_check
      _
    $region35: #{final_layer.1} parent=1 // pred_check_branch
      %155 = sbr.rel (0) target = $region37
    $region36: #{final_layer.1} parent=1 // pred_region
      %157 = vsyncadd [#allocation4], 0
      %s158 = sshll.u32 [#allocation8], 4
      %s159 = int_to_ptr.vmem [resolvable:$true] %s158
      %s160 = sshll.u32 %s5, 4
      %s161 = int_to_ptr.hbm [resolvable:$true] %s160
      %166 = dma.vmem_to_hbm [thread:$0]  %s159, 256, %s161, [#allocation4], 128, 128, 8
    $region37: #{final_layer.1} parent=1 // pred_fallthru
      _
    // Predicated region
    $region38: #{final_layer.1} parent=1 // pred_check
      _
    $region39: #{final_layer.1} parent=1 // pred_check_branch
      %168 = sbr.rel (0) target = $region41
    $region40: #{final_layer.1} parent=1 // pred_region
      %170 = dma.done [#allocation4], 256
    $region41: #{final_layer.1} parent=1 // pred_fallthru
      _
    %171 = vsyncpa [#allocation3], 1
    %172 = vsyncpa [#allocation6], 1
    %173 = vsyncpa [#allocation4], 1

</llo_original>
